<compile_context>
chip_gen: v7x
topology: tpu7x:2x2x1
jax: 0.10.0
libtpu: 0.0.40
codegen_flags: <defaults>
</compile_context>

<pallas_src>
import jax
import jax.numpy as jnp
from jax.experimental import pallas as pl
from jax.experimental.pallas import tpu as pltpu


def _rescale_kernel(x_ref, rs_ref, cs_ref, o_ref):
    # x_ref:  (TILE_R, K) VMEM tile
    # rs_ref: (TILE_R, 1) per-row (channel) scale tile
    # cs_ref: (1, K)      per-column (h*w) scale row, resident across the grid
    o_ref[...] = x_ref[...] * rs_ref[...] * cs_ref[...]


def _choose_tile_r(R, K, itemsize):
    """Pick a row-tile: multiple of 8, divides R, fits the VMEM budget."""
    # Double-buffered x-in and out tiles ~= 4 * TILE_R * K * itemsize live.
    # Keep this comfortably under the 32 MiB default scoped VMEM limit
    # (also leaves headroom on v7x's 64 MiB physical VMEM).
    budget = 16 * 1024 * 1024
    cap = max(8, budget // max(1, 4 * K * itemsize))
    for t in (1024, 512, 256, 128, 64, 32, 16, 8):
        if t <= cap and R % t == 0:
            return t
    return R  # awkward / tiny R: single full-extent block


def learned_rescale_2d(x, scale_a, scale_b, scale_c):
    """out = x * scale_a * scale_b * scale_c (XNOR-Net++ learned rescale).

    x: (N, C, H, W); scale_a: (C,1,1); scale_b: (1,H,1); scale_c: (1,1,W).
    """
    N, C, H, W = x.shape
    R, K = N * C, H * W
    dt = x.dtype
    itemsize = jnp.dtype(dt).itemsize

    a = scale_a.reshape(C).astype(dt)
    b = scale_b.reshape(H).astype(dt)
    c = scale_c.reshape(W).astype(dt)

    # Combine parameters only (tiny, done once per call, not per tile):
    row_scale = jnp.tile(a, N).reshape(R, 1)            # scale_a[c] for row (n, c)
    col_scale = (b[:, None] * c[None, :]).reshape(1, K)  # scale_b[h] * scale_c[w]

    x2d = x.reshape(R, K)  # free row-major reshape; K maps to the lane axis

    tile_r = _choose_tile_r(R, K, itemsize)
    grid = (R // tile_r,)

    out2d = pl.pallas_call(
        _rescale_kernel,
        out_shape=jax.ShapeDtypeStruct((R, K), dt),
        grid_spec=pltpu.PrefetchScalarGridSpec(
            num_scalar_prefetch=0,
            grid=grid,
            in_specs=[
                pl.BlockSpec((tile_r, K), lambda i: (i, 0)),  # x row-tile
                pl.BlockSpec((tile_r, 1), lambda i: (i, 0)),  # per-row scale tile
                pl.BlockSpec((1, K), lambda i: (0, 0)),       # col scale, VMEM-resident
            ],
            out_specs=pl.BlockSpec((tile_r, K), lambda i: (i, 0)),
        ),
        compiler_params=pltpu.CompilerParams(
            # Row-tiles are independent -> shard across TensorCores on v7x;
            # measured-neutral on single-TC v5e/v6e.
            dimension_semantics=("parallel",),
        ),
    )(x2d, row_scale, col_scale)

    return out2d.reshape(N, C, H, W)


if __name__ == "__main__":
    key = jax.random.PRNGKey(0)
    kx, ka, kb, kc = jax.random.split(key, 4)

    # Small shapes consistent with the module: input_shapes = (N, C, H, W)
    N, C, H, W = 2, 4, 16, 16

    x = jax.random.normal(kx, (N, C, H, W), dtype=jnp.float32)

    # The module initializes the scales to ones; use random (deterministic)
    # values here so the broadcast math is actually exercised.
    scale_a = jax.random.normal(ka, (C, 1, 1), dtype=jnp.float32)
    scale_b = jax.random.normal(kb, (1, H, 1), dtype=jnp.float32)
    scale_c = jax.random.normal(kc, (1, 1, W), dtype=jnp.float32)

    out = learned_rescale_2d(x, scale_a, scale_b, scale_c)
    out = jax.block_until_ready(out)

    # Pure-JAX reference (same broadcasting semantics as the PyTorch forward).
    ref = (x
           * scale_a.reshape(1, C, 1, 1)
           * scale_b.reshape(1, 1, H, 1)
           * scale_c.reshape(1, 1, 1, W))

    assert out.shape == (N, C, H, W)
    assert jnp.allclose(out, ref, atol=1e-6, rtol=1e-6), "mismatch vs reference"

    print("KERNEL_OK")
</pallas_src>

<mosaic_0001>
module attributes {stable_mosaic.version = 11 : i64} {
  func.func @_rescale_kernel(%arg0: i32, %arg1: memref<8x256xf32, #tpu.memory_space<vmem>>, %arg2: memref<8x1xf32, #tpu.memory_space<vmem>>, %arg3: memref<1x256xf32, #tpu.memory_space<vmem>>, %arg4: memref<8x256xf32, #tpu.memory_space<vmem>>) attributes {dimension_semantics = [#tpu.dimension_semantics<parallel>], iteration_bounds = array<i64: 1>, scalar_prefetch = 0 : i64, scratch_operands = 0 : i64, tpu.core_type = #tpu.core_type<tc>, window_params = [{transform_indices = @transform_0, window_bounds = array<i64: 8, 256>}, {transform_indices = @transform_1, window_bounds = array<i64: 8, 1>}, {pipeline_mode = #tpu.pipeline_mode<synchronous>, transform_indices = @transform_2, window_bounds = array<i64: 1, 256>}, {transform_indices = @transform_3, window_bounds = array<i64: 8, 256>}]} {
    %c0 = arith.constant 0 : index
    %c0_0 = arith.constant 0 : index
    %0 = vector.load %arg1[%c0, %c0_0] : memref<8x256xf32, #tpu.memory_space<vmem>>, vector<8x256xf32>
    %c0_1 = arith.constant 0 : index
    %c0_2 = arith.constant 0 : index
    %1 = vector.load %arg2[%c0_1, %c0_2] : memref<8x1xf32, #tpu.memory_space<vmem>>, vector<8x1xf32>
    %2 = vector.broadcast %1 : vector<8x1xf32> to vector<8x256xf32>
    %3 = arith.mulf %0, %2 : vector<8x256xf32>
    %c0_3 = arith.constant 0 : index
    %c0_4 = arith.constant 0 : index
    %4 = vector.load %arg3[%c0_3, %c0_4] : memref<1x256xf32, #tpu.memory_space<vmem>>, vector<1x256xf32>
    %5 = vector.broadcast %4 : vector<1x256xf32> to vector<8x256xf32>
    %6 = arith.mulf %3, %5 : vector<8x256xf32>
    %c0_5 = arith.constant 0 : index
    %c0_6 = arith.constant 0 : index
    %7 = vector.load %arg4[%c0_5, %c0_6] : memref<8x256xf32, #tpu.memory_space<vmem>>, vector<8x256xf32>
    tpu.vector_store %arg4[%c0_5, %c0_6], %6 {strides = array<i32>} : memref<8x256xf32, #tpu.memory_space<vmem>>, vector<8x256xf32>,
    return
  }
  func.func @transform_0(%arg0: i32) -> (i32, i32) {
    %c0_i32 = arith.constant 0 : i32
    %c0_i32_0 = arith.constant 0 : i32
    return %arg0, %c0_i32 : i32, i32
  }
  func.func @transform_1(%arg0: i32) -> (i32, i32) {
    %c0_i32 = arith.constant 0 : i32
    %c0_i32_0 = arith.constant 0 : i32
    return %arg0, %c0_i32 : i32, i32
  }
  func.func @transform_2(%arg0: i32) -> (i32, i32) {
    %c0_i32 = arith.constant 0 : i32
    %c0_i32_0 = arith.constant 0 : i32
    %c0_i32_1 = arith.constant 0 : i32
    return %c0_i32, %c0_i32_0 : i32, i32
  }
  func.func @transform_3(%arg0: i32) -> (i32, i32) {
    %c0_i32 = arith.constant 0 : i32
    %c0_i32_0 = arith.constant 0 : i32
    return %arg0, %c0_i32 : i32, i32
  }
}

</mosaic_0001>

<llo_original>
// kernel: tpu_custom_call.1
$region0: #{tpu_custom_call.1}
  #allocation0 [shape = 'u32[]', space=smem, size = 0x4, offset = 0x4, fixed_abs, tag = 'smem constant byte address 0x4 - core index']
  #allocation1 [shape = 'u32[144,128]{1,0:T(1,128)}', space=vmem, size = 0x12000, scoped, tag = 'internal scratch']
  %s0 = inlined_call_operand.hbm [shape: f32[8,256], index: 0, kind: input, shape index: {}]
  %s1 = inlined_call_operand.vmem [shape: f32[8,1], index: 1, kind: input, shape index: {}]
  %s2 = inlined_call_operand.vmem [shape: f32[1,256], index: 2, kind: input, shape index: {}]
  %s3 = inlined_call_operand.hbm [shape: f32[8,256], index: 3, kind: output, shape index: {}]
  %s4 = sld [smem:[#allocation0]]
  $region26: #{tpu_custom_call.1} parent=0
    _
  %s6 = ssub.s32 1, %s4
  %s7 = scalar_select 0, %s6, %s4
  $region1: #{tpu_custom_call.1} parent=0
    #allocation2 [shape = 'u8[8192]{0}', space=vmem, size = 0x2000, scoped, tag = 'input window, operand 0, single buffered']
    #allocation3 [shape = 's32[1]{0}', space=sflag, size = 0x4, scoped, tag = 'scoped memory for tpu_custom_call.1']
    #allocation4 [shape = 's32[1]{0}', space=sflag, size = 0x4, scoped, tag = 'scoped memory for tpu_custom_call.1']
    #allocation5 [shape = 'u8[8192]{0}', space=vmem, size = 0x2000, scoped, tag = 'output window, operand 0, single buffered']
    %8 = vsyncpa [#allocation3], 0
    %9 = vsyncpa [#allocation4], 0
    // Predicated region
    $region2: #{tpu_custom_call.1} parent=1 // pred_check
      _
    $region3: #{tpu_custom_call.1} parent=1 // pred_check_branch
      %11 = sbr.rel (0) target = $region5
    $region4: #{tpu_custom_call.1} parent=1 // pred_region
      %s13 = ssub.s32 256, 256
      %14 = vsyncadd [#allocation3], %s13
      %s16 = sshll.u32 [#allocation2], 4
      %s17 = int_to_ptr.vmem [resolvable:$true] %s16
      %19 = dma.hbm_to_vmem [thread:$0]  %s0, 256, %s17, [#allocation3]
    $region5: #{tpu_custom_call.1} parent=1 // pred_fallthru
      _
    // Predicated region
    $region6: #{tpu_custom_call.1} parent=1 // pred_check
      _
    $region7: #{tpu_custom_call.1} parent=1 // pred_check_branch
      %21 = sbr.rel (0) target = $region9
    $region8: #{tpu_custom_call.1} parent=1 // pred_region
      _
    $region9: #{tpu_custom_call.1} parent=1 // pred_fallthru
      _
    // Predicated region
    $region10: #{tpu_custom_call.1} parent=1 // pred_check
      _
    $region11: #{tpu_custom_call.1} parent=1 // pred_check_branch
      %23 = sbr.rel (0) target = $region13
    $region12: #{tpu_custom_call.1} parent=1 // pred_region
      _
    $region13: #{tpu_custom_call.1} parent=1 // pred_fallthru
      _
    // Predicated region
    $region14: #{tpu_custom_call.1} parent=1 // pred_check
      _
    $region15: #{tpu_custom_call.1} parent=1 // pred_check_branch
      %25 = sbr.rel (0) target = $region17
    $region16: #{tpu_custom_call.1} parent=1 // pred_region
      %26 = dma.done [#allocation3], 256
    $region17: #{tpu_custom_call.1} parent=1 // pred_fallthru
      _
    %v27 = vld [vmem:[#allocation2] sm:$0xff]
    %v28 = vld [vmem:[#allocation2 + $0x8] sm:$0xff]
    %v29 = vld [vmem:[%s1] sm:$0xff]
    %31 = vset.pattern.permute.xlu0 0
    %32 = vperm.xlu0 %31, %v29
    %v33 = vpop.permute.xlu0 %32
    %v35 = vmul.f32 %v27, %v33
    %v36 = vmul.f32 %v28, %v33
    %v37 = vld [vmem:[%s2] sm:$0x3]
    %v39 = vlaneseq
    %v40 = vshrl.u32 %v39, 7
    %v41 = vsub.s32 0, %v40
    %v42 = vrot.slane %v37, %v41
    %v43 = vlaneseq
    %v44 = vshrl.u32 %v43, 7
    %v45 = vsub.s32 1, %v44
    %v46 = vrot.slane %v37, %v45
    %v49 = vmul.f32 %v35, %v42
    %v50 = vmul.f32 %v36, %v46
    %51 = vst [vmem:[#allocation5] sm:$0xff] %v49
    %52 = vst [vmem:[#allocation5 + $0x8] sm:$0xff] %v50
    // Predicated region
    $region18: #{tpu_custom_call.1} parent=1 // pred_check
      _
    $region19: #{tpu_custom_call.1} parent=1 // pred_check_branch
      %54 = sbr.rel (0) target = $region21
    $region20: #{tpu_custom_call.1} parent=1 // pred_region
      %s56 = ssub.s32 256, 256
      %57 = vsyncadd [#allocation4], %s56
      %s59 = sshll.u32 [#allocation5], 4
      %s60 = int_to_ptr.vmem [resolvable:$true] %s59
      %62 = dma.vmem_to_hbm [thread:$0]  %s60, 256, %s3, [#allocation4]
    $region21: #{tpu_custom_call.1} parent=1 // pred_fallthru
      _
    // Predicated region
    $region22: #{tpu_custom_call.1} parent=1 // pred_check
      _
    $region23: #{tpu_custom_call.1} parent=1 // pred_check_branch
      %64 = sbr.rel (0) target = $region25
    $region24: #{tpu_custom_call.1} parent=1 // pred_region
      %65 = dma.done [#allocation4], 256
    $region25: #{tpu_custom_call.1} parent=1 // pred_fallthru
      _
    %66 = vsyncpa [#allocation3], 1
    %67 = vsyncpa [#allocation4], 1

</llo_original>
